<compile_context>
chip_gen: v5e
topology: v5e:2x2
jax: 0.10.0
libtpu: 0.0.40
codegen_flags: <defaults>
</compile_context>

<pallas_src>
import functools

import jax
import jax.numpy as jnp
from jax.experimental import pallas as pl
from jax.experimental.pallas import tpu as pltpu


_LANE_CANDIDATES = (2048, 1024, 512, 256, 128)
_TARGET_TILE_BYTES = 8 * 1024 * 1024     # per-step input tile (x2 for double buffering)
_VMEM_LIMIT_BYTES = 32 * 1024 * 1024     # explicit scoped-VMEM budget, safe on v5e/v6e/v7x
_STRIP_F32_BYTES = 512 * 1024            # f32 bytes per in-kernel accumulation strip


def _num_tensorcores():
    """Best-effort TensorCores-per-chip (2 on v7x megacore, 1 on v5e/v6e)."""
    try:
        info = pltpu.get_tpu_info()
        for attr in ("num_cores", "core_count", "num_tensorcores",
                     "tensorcore_count", "num_tensor_cores"):
            v = getattr(info, attr, None)
            if isinstance(v, int) and v >= 1:
                return v
    except Exception:
        pass
    try:
        dev = jax.devices()[0]
        for attr in ("num_cores", "core_count"):
            v = getattr(dev, attr, None)
            if isinstance(v, int) and v >= 1:
                return v
        kind = str(getattr(dev, "device_kind", "")).lower()
        if "v7" in kind:
            return 2
    except Exception:
        pass
    return 1


def _entropy_sum_kernel(x_ref, o_ref, acc_ref, *, eps, rows, tile_rows,
                        strip_rows, strips, blocks_per_partial, any_masked):
    """Accumulate sum(x * log(x + eps)) for one partial (outer grid axis).

    x_ref  : (tile_rows, lane) VMEM tile of the flattened input slab
    o_ref  : (1, 1, 128) lane-dense output block for this partial
    acc_ref: (strip_rows, lane) f32 lane-resident accumulator (VMEM scratch)
    """
    p = pl.program_id(0)
    j = pl.program_id(1)

    @pl.when(j == 0)
    def _init():
        acc_ref[...] = jnp.zeros_like(acc_ref)

    # Logical first row of this tile in the (rows, lane) slab.  For clamped
    # duplicate blocks (odd tiling split across partials) row0 >= rows, so the
    # masked path zeroes the whole tile.
    row0 = (p * blocks_per_partial + j) * tile_rows

    def _strip_at(start, masked):
        xs = x_ref[pl.ds(start, strip_rows), :].astype(jnp.float32)
        if masked:
            # Mask BEFORE the log so out-of-bounds garbage never produces NaN.
            local = jax.lax.broadcasted_iota(jnp.int32, xs.shape, 0)
            xs = jnp.where(row0 + start + local < rows, xs, 0.0)
        # Negation is deferred to the wrapper (one fewer VPU op per element).
        acc_ref[...] += xs * jnp.log(xs + eps)

    def _accumulate(masked):
        if strips == 1:
            _strip_at(0, masked)
        else:
            def body(s, carry):
                _strip_at(pl.multiple_of(s * strip_rows, strip_rows), masked)
                return carry
            jax.lax.fori_loop(0, strips, body, 0, unroll=min(strips, 8))

    if any_masked:
        boundary = row0 + tile_rows > rows

        @pl.when(boundary)
        def _masked_path():
            _accumulate(True)

        @pl.when(jnp.logical_not(boundary))
        def _fast_path():
            _accumulate(False)
    else:
        _accumulate(False)

    @pl.when(j == pl.num_programs(1) - 1)
    def _finalize():
        total = jnp.sum(acc_ref[...])       # single cross-lane reduce per partial
        o_ref[...] = jnp.full(o_ref.shape, total, jnp.float32)


@functools.partial(jax.jit, static_argnums=(1, 2, 3))
def _entropy_loss_encap_impl(x, eps, target_tile_bytes, num_partials_hint):
    c = x.shape[1]
    t = x.size
    n_score_rows = t // c                   # M = numel / C (rows of permuted score map)
    itemsize = x.dtype.itemsize
    pack = max(1, 4 // itemsize)            # sub-32-bit dtypes pack along sublanes
    sub = 8 * pack                          # clean sublane granularity, in rows

    flat = x.reshape(-1)                    # contiguous: free reshape, no permute

    lane = None
    for cand in _LANE_CANDIDATES:
        if t % cand == 0:
            lane = cand
            break
    if lane is None:
        # Rare fallback: element count not a multiple of 128 -> pad with zeros
        # (zeros contribute exactly 0 to the sum; denominator uses the original M).
        lane = 128
        t_pad = pl.cdiv(t, lane) * lane
        flat = jnp.pad(flat, (0, t_pad - t))

    mat = flat.reshape(-1, lane)
    rows = mat.shape[0]

    # --- tile / strip sizing -------------------------------------------------
    # Strip = rows processed per unrolled fori step; the accumulator (and the
    # largest transient) is strip-sized, never tile-sized.
    strip_rows = max(sub, (_STRIP_F32_BYTES // (lane * 4)) // sub * sub)

    # Keep (2 pipeline buffers x input tile) + strip acc + transients well under
    # the explicit VMEM limit (v7x has only 64 MiB physical / 32 MiB scoped).
    tile_budget_bytes = (_VMEM_LIMIT_BYTES - 8 * 1024 * 1024) // 2
    tgt_bytes = max(min(int(target_tile_bytes), tile_budget_bytes),
                    lane * itemsize * sub)
    tgt_rows = tgt_bytes // (lane * itemsize)

    if rows < sub:
        tile_rows = rows                    # full-dim block (allowed)
        strip_rows = rows
    elif rows < strip_rows:
        strip_rows = sub
        tile_rows = min((rows // sub) * sub, max(sub, (tgt_rows // sub) * sub))
    else:
        max_tile_rows = max(strip_rows, (tgt_rows // strip_rows) * strip_rows)
        tile_rows = min(max_tile_rows, (rows // strip_rows) * strip_rows)
    strips = max(1, tile_rows // strip_rows)

    n_tiles = pl.cdiv(rows, tile_rows)

    # Leading parallel axis: one partial per TensorCore (2 on v7x, 1 on v5e/v6e).
    num_partials = 1 if n_tiles < 2 else max(1, min(int(num_partials_hint), n_tiles))
    blocks_per_partial = pl.cdiv(n_tiles, num_partials)
    any_masked = (num_partials * blocks_per_partial * tile_rows) != rows

    if num_partials * blocks_per_partial > n_tiles:
        # Clamp the logical block index so DMAs stay in bounds; the duplicated
        # blocks are fully zeroed by the boundary mask (logical row0 >= rows).
        def in_index_map(p, j):
            return (jnp.minimum(p * blocks_per_partial + j, n_tiles - 1), 0)
    else:
        def in_index_map(p, j):
            return (p * blocks_per_partial + j, 0)

    kernel = functools.partial(
        _entropy_sum_kernel,
        eps=eps, rows=rows, tile_rows=tile_rows, strip_rows=strip_rows,
        strips=strips, blocks_per_partial=blocks_per_partial,
        any_masked=any_masked)

    partials = pl.pallas_call(
        kernel,
        out_shape=jax.ShapeDtypeStruct((num_partials, 1, 128), jnp.float32),
        grid_spec=pltpu.PrefetchScalarGridSpec(
            num_scalar_prefetch=0,
            grid=(num_partials, blocks_per_partial),
            in_specs=[pl.BlockSpec((tile_rows, lane), in_index_map)],
            out_specs=pl.BlockSpec((1, 1, 128), lambda p, j: (p, 0, 0)),
            scratch_shapes=[pltpu.VMEM((strip_rows, lane), jnp.float32)],
        ),
        compiler_params=pltpu.CompilerParams(
            dimension_semantics=("parallel", "arbitrary"),
            vmem_limit_bytes=_VMEM_LIMIT_BYTES,
        ),
    )(mat)

    # Note: f32 lane-resident accumulation reorders the sum vs. the reference;
    # fine at rtol=1e-5 for typical sizes.
    total = jnp.sum(partials[:, 0, 0])
    return -total / jnp.float32(n_score_rows)


def entropy_loss_encap(x, eps=1e-12, target_tile_bytes=_TARGET_TILE_BYTES,
                       num_partials=None):
    """JAX/Pallas equivalent of EntropyLossEncap().forward(x). Returns a scalar."""
    if x.ndim < 2:
        raise ValueError("wrong feature map size")
    if num_partials is None:
        num_partials = _num_tensorcores()
    return _entropy_loss_encap_impl(x, float(eps), int(target_tile_bytes),
                                    int(num_partials))


def _reference(x, eps=1e-12):
    """Pure-JAX reference mirroring the PyTorch code (with the explicit permute)."""
    c = x.shape[1]
    score = jnp.moveaxis(x, 1, -1).reshape(-1, c) if x.ndim > 2 else x
    b = score * jnp.log(score + eps)
    b = -1.0 * b.sum(axis=1)
    return b.mean()


if __name__ == "__main__":
    key = jax.random.PRNGKey(0)

    # Test 1: small NCHW input, softmax over channels (score-map like).
    x = jax.random.normal(key, (2, 4, 16, 16), dtype=jnp.float32)
    x = jax.nn.softmax(x, axis=1)
    loss = entropy_loss_encap(x)
    jax.block_until_ready(loss)
    ref = _reference(x)
    assert jnp.allclose(loss, ref, rtol=1e-5, atol=1e-6), (loss, ref)

    # Test 2: awkward shape (numel not a multiple of 128) with a tiny tile
    # override to exercise the multi-tile / multi-strip / masked-boundary paths.
    x2 = jax.nn.softmax(
        jax.random.normal(jax.random.PRNGKey(1), (2, 6, 20, 20), dtype=jnp.float32),
        axis=1)
    loss2 = entropy_loss_encap(x2, target_tile_bytes=8192)
    jax.block_until_ready(loss2)
    ref2 = _reference(x2)
    assert jnp.allclose(loss2, ref2, rtol=1e-5, atol=1e-6), (loss2, ref2)

    # Test 2b: force 2 partials (megacore-style split) to exercise the clamped
    # duplicate-block / fully-masked path even on single-core chips.
    loss2b = entropy_loss_encap(x2, target_tile_bytes=8192, num_partials=2)
    jax.block_until_ready(loss2b)
    assert jnp.allclose(loss2b, ref2, rtol=1e-5, atol=1e-6), (loss2b, ref2)

    # Test 3: bf16 input (packed-sublane tiling path); kernel accumulates in f32.
    x3 = jax.nn.softmax(
        jax.random.normal(jax.random.PRNGKey(2), (2, 8, 16, 16), dtype=jnp.bfloat16),
        axis=1)
    loss3 = entropy_loss_encap(x3)
    jax.block_until_ready(loss3)
    ref3 = _reference(x3.astype(jnp.float32))
    assert jnp.allclose(loss3, ref3, rtol=1e-5, atol=1e-6), (loss3, ref3)

    print("KERNEL_OK")
</pallas_src>

<mosaic_0001>
module attributes {stable_mosaic.version = 11 : i64} {
  func.func @_entropy_sum_kernel(%arg0: i32, %arg1: i32, %arg2: memref<1x2048xf32, #tpu.memory_space<vmem>>, %arg3: memref<1x1x128xf32, #tpu.memory_space<vmem>>, %arg4: memref<1x2048xf32, #tpu.memory_space<vmem>>) attributes {dimension_semantics = [#tpu.dimension_semantics<parallel>, #tpu.dimension_semantics<arbitrary>], iteration_bounds = array<i64: 1, 1>, scalar_prefetch = 0 : i64, scratch_operands = 1 : i64, tpu.core_type = #tpu.core_type<tc>, window_params = [{transform_indices = @transform_0, window_bounds = array<i64: 1, 2048>}, {transform_indices = @transform_1, window_bounds = array<i64: 1, 1, 128>}]} {
    %c0_i32 = arith.constant 0 : i32
    %0 = arith.cmpi eq, %arg1, %c0_i32 : i32
    %1 = arith.extui %0 : i1 to i32
    %c0_i32_0 = arith.constant 0 : i32
    %2 = arith.cmpi ne, %1, %c0_i32_0 : i32
    scf.if %2 {
      %cst_8 = arith.constant 0.000000e+00 : f32
      %14 = vector.broadcast %cst_8 : f32 to vector<1x2048xf32>
      %c0_9 = arith.constant 0 : index
      %c0_10 = arith.constant 0 : index
      %15 = vector.load %arg4[%c0_9, %c0_10] : memref<1x2048xf32, #tpu.memory_space<vmem>>, vector<1x2048xf32>
      tpu.vector_store %arg4[%c0_9, %c0_10], %14 {strides = array<i32>} : memref<1x2048xf32, #tpu.memory_space<vmem>>, vector<1x2048xf32>,
    } else {
    }
    %c0 = arith.constant 0 : index
    %c0_1 = arith.constant 0 : index
    %3 = vector.load %arg2[%c0, %c0_1] : memref<1x2048xf32, #tpu.memory_space<vmem>>, vector<1x2048xf32>
    %c0_2 = arith.constant 0 : index
    %c0_3 = arith.constant 0 : index
    %4 = vector.load %arg4[%c0_2, %c0_3] : memref<1x2048xf32, #tpu.memory_space<vmem>>, vector<1x2048xf32>
    %cst = arith.constant 9.99999996E-13 : f32
    %5 = vector.broadcast %cst : f32 to vector<1x2048xf32>
    %6 = arith.addf %3, %5 : vector<1x2048xf32>
    %7 = math.log %6 : vector<1x2048xf32>
    %8 = arith.mulf %3, %7 : vector<1x2048xf32>
    %9 = arith.addf %4, %8 : vector<1x2048xf32>
    %c0_4 = arith.constant 0 : index
    %c0_5 = arith.constant 0 : index
    %10 = vector.load %arg4[%c0_4, %c0_5] : memref<1x2048xf32, #tpu.memory_space<vmem>>, vector<1x2048xf32>
    tpu.vector_store %arg4[%c0_4, %c0_5], %9 {strides = array<i32>} : memref<1x2048xf32, #tpu.memory_space<vmem>>, vector<1x2048xf32>,
    %c0_i32_6 = arith.constant 0 : i32
    %11 = arith.cmpi eq, %arg1, %c0_i32_6 : i32
    %12 = arith.extui %11 : i1 to i32
    %c0_i32_7 = arith.constant 0 : i32
    %13 = arith.cmpi ne, %12, %c0_i32_7 : i32
    scf.if %13 {
      %c0_8 = arith.constant 0 : index
      %c0_9 = arith.constant 0 : index
      %14 = vector.load %arg4[%c0_8, %c0_9] : memref<1x2048xf32, #tpu.memory_space<vmem>>, vector<1x2048xf32>
      %15 = vector.shape_cast %14 : vector<1x2048xf32> to vector<1x1x2048xf32>
      %cst_10 = arith.constant dense<0.000000e+00> : vector<1xf32>
      %16 = vector.multi_reduction <add>, %15, %cst_10 [1, 2] : vector<1x1x2048xf32> to vector<1xf32>
      %17 = vector.shape_cast %16 : vector<1xf32> to vector<1x1x1xf32>
      %18 = vector.extract %17[0, 0, 0] : f32 from vector<1x1x1xf32>
      %19 = vector.broadcast %18 : f32 to vector<1x1x128xf32>
      %c0_11 = arith.constant 0 : index
      %c0_12 = arith.constant 0 : index
      %c0_13 = arith.constant 0 : index
      %20 = vector.load %arg3[%c0_11, %c0_12, %c0_13] : memref<1x1x128xf32, #tpu.memory_space<vmem>>, vector<1x1x128xf32>
      tpu.vector_store %arg3[%c0_11, %c0_12, %c0_13], %19 {strides = array<i32>} : memref<1x1x128xf32, #tpu.memory_space<vmem>>, vector<1x1x128xf32>,
    } else {
    }
    return
  }
  func.func @transform_0(%arg0: i32, %arg1: i32) -> (i32, i32) {
    %c1_i32 = arith.constant 1 : i32
    %0 = arith.muli %arg0, %c1_i32 : i32
    %1 = arith.addi %0, %arg1 : i32
    %c0_i32 = arith.constant 0 : i32
    %c0_i32_0 = arith.constant 0 : i32
    return %1, %c0_i32 : i32, i32
  }
  func.func @transform_1(%arg0: i32, %arg1: i32) -> (i32, i32, i32) {
    %c0_i32 = arith.constant 0 : i32
    %c0_i32_0 = arith.constant 0 : i32
    %c0_i32_1 = arith.constant 0 : i32
    return %arg0, %c0_i32, %c0_i32_0 : i32, i32, i32
  }
}

</mosaic_0001>

<llo_original>
// kernel: _entropy_loss_encap_impl.1
$region0: #{_entropy_loss_encap_impl.1}
  #allocation0 [shape = 'u32[]', space=smem, size = 0x4, offset = 0x4, fixed_abs, tag = 'smem constant byte address 0x4 - core index']
  #allocation1 [shape = 'u32[72,128]{1,0:T(1,128)}', space=vmem, size = 0x9000, scoped, tag = 'internal scratch']
  #allocation2 [shape = 'f32[1,2048]{1,0:T(1,128)}', space=vmem, size = 0x2000, scoped, tag = 'scratch operand']
  %s0 = inlined_call_operand.vmem [shape: f32[1,2048], index: 0, kind: input, shape index: {}]
  %s1 = inlined_call_operand.vmem [shape: f32[1,1,128], index: 1, kind: output, shape index: {}]
  %s2 = sld [smem:[#allocation0]]
  $region22: #{_entropy_loss_encap_impl.1} parent=0
    _
  %s4 = ssub.s32 1, %s2
  %s5 = scalar_select 0, %s4, %s2
  // Predicated region
  $region2: #{_entropy_loss_encap_impl.1} parent=0 // pred_check
    _
  $region3: #{_entropy_loss_encap_impl.1} parent=0 // pred_check_branch
    %7 = sbr.rel (0) target = $region5
  $region4: #{_entropy_loss_encap_impl.1} parent=0 // pred_region
    %s8 = sadd.s32 0, 0
    %p9 = scmp.lt.s32.totalorder %s8, 0
    %s10 = scalar_select %p9, %s8, 0
    %s11 = smul.addr %s10, 16
    %s12 = scalar_lea.vmem %s0, %s11
    %s13 = sadd.s32 0, 0
  $region5: #{_entropy_loss_encap_impl.1} parent=0 // pred_fallthru
    _
  %s14 = sadd.s32 0, 0
  %p15 = scmp.lt.s32.totalorder %s14, 0
  %s16 = scalar_select %p15, %s14, 0
  %s17 = smul.addr %s16, 16
  %s18 = scalar_lea.vmem %s0, %s17
  %s19 = sadd.s32 0, 0
  %p20 = scmp.lt.s32.totalorder %s19, 0
  %s21 = scalar_select %p20, %s19, 0
  %s22 = smul.addr %s21, 16
  %s23 = scalar_lea.vmem %s0, %s22
  %s24 = sadd.s32 0, 0
  %p25 = scmp.eq.s32.totalorder 0, 0
  // Predicated region
  $region6: #{_entropy_loss_encap_impl.1} parent=0 // pred_check
    %p26 = pneg %p25
  $region7: #{_entropy_loss_encap_impl.1} parent=0 // pred_check_branch
    %28 = sbr.rel (%p26) target = $region9
  $region8: #{_entropy_loss_encap_impl.1} parent=0 // pred_region
    %29 = vst [vmem:[#allocation2] sm:$0xff] 0.0
    %30 = vst [vmem:[#allocation2 + $0x8] sm:$0xff] 0.0
  $region9: #{_entropy_loss_encap_impl.1} parent=0 // pred_fallthru
    _
  %v31 = vld [vmem:[%s23] sm:$0xff]
  %v32 = vld [vmem:[%s23 + $0x8] sm:$0xff]
  %v33 = vld [vmem:[#allocation2] sm:$0xff]
  %v34 = vld [vmem:[#allocation2 + $0x8] sm:$0xff]
  %v35 = vadd.f32 %v31, 1e-12
  %v36 = vadd.f32 %v32, 1e-12
  %v37 = vlog2.pop %v35
  %v38 = vmul.f32 %v37, 0.6931472
  %v39 = vlog2.pop %v36
  %v40 = vmul.f32 %v39, 0.6931472
  %v41 = vmul.f32 %v31, %v38
  %v42 = vmul.f32 %v32, %v40
  %v43 = vadd.f32 %v33, %v41
  %v44 = vadd.f32 %v34, %v42
  %45 = vst [vmem:[#allocation2] sm:$0xff] %v43
  %46 = vst [vmem:[#allocation2 + $0x8] sm:$0xff] %v44
  // Predicated region
  $region10: #{_entropy_loss_encap_impl.1} parent=0 // pred_check
    %p47 = pneg %p25
  $region11: #{_entropy_loss_encap_impl.1} parent=0 // pred_check_branch
    %49 = sbr.rel (%p47) target = $region13
  $region12: #{_entropy_loss_encap_impl.1} parent=0 // pred_region
    %v50 = vld [vmem:[#allocation2] sm:$0xff]
    %v51 = vld [vmem:[#allocation2 + $0x8] sm:$0xff]
    %v54 = vperm.slane %v50, 0
    %v55 = vperm.slane %v50, 1
    %v56 = vperm.slane %v50, 2
    %v57 = vperm.slane %v50, 3
    %v58 = vperm.slane %v50, 4
    %v59 = vperm.slane %v50, 5
    %v60 = vperm.slane %v50, 6
    %v61 = vperm.slane %v50, 7
    %v62 = vperm.slane %v51, 0
    %v63 = vperm.slane %v51, 1
    %v64 = vperm.slane %v51, 2
    %v65 = vperm.slane %v51, 3
    %v66 = vperm.slane %v51, 4
    %v67 = vperm.slane %v51, 5
    %v68 = vperm.slane %v51, 6
    %v69 = vperm.slane %v51, 7
    %vm86 = vcmask 1040384
    %v87 = vsel %vm86, %v54, 0.0
    %v88 = vsel %vm86, %v55, 0.0
    %v89 = vadd.f32 %v87, %v88
    %v90 = vsel %vm86, %v56, 0.0
    %v91 = vadd.f32 %v89, %v90
    %v92 = vsel %vm86, %v57, 0.0
    %v93 = vadd.f32 %v91, %v92
    %v94 = vsel %vm86, %v58, 0.0
    %v95 = vadd.f32 %v93, %v94
    %v96 = vsel %vm86, %v59, 0.0
    %v97 = vadd.f32 %v95, %v96
    %v98 = vsel %vm86, %v60, 0.0
    %v99 = vadd.f32 %v97, %v98
    %v100 = vsel %vm86, %v61, 0.0
    %v101 = vadd.f32 %v99, %v100
    %v102 = vsel %vm86, %v62, 0.0
    %v103 = vadd.f32 %v101, %v102
    %v104 = vsel %vm86, %v63, 0.0
    %v105 = vadd.f32 %v103, %v104
    %v106 = vsel %vm86, %v64, 0.0
    %v107 = vadd.f32 %v105, %v106
    %v108 = vsel %vm86, %v65, 0.0
    %v109 = vadd.f32 %v107, %v108
    %v110 = vsel %vm86, %v66, 0.0
    %v111 = vadd.f32 %v109, %v110
    %v112 = vsel %vm86, %v67, 0.0
    %v113 = vadd.f32 %v111, %v112
    %v114 = vsel %vm86, %v68, 0.0
    %v115 = vadd.f32 %v113, %v114
    %v116 = vsel %vm86, %v69, 0.0
    %v117 = vadd.f32 %v115, %v116
    %118 = vadd.xlane.f32.xlu0 %v117
    %v119 = vpop.xlane.xlu0 %118
    %v120 = vrot.slane %v119, 4
    %v121 = vadd.f32 %v119, %v120
    %v122 = vrot.slane %v121, 2
    %v123 = vadd.f32 %v121, %v122
    %v124 = vrot.slane %v123, 1
    %v125 = vadd.f32 %v123, %v124
    %s126 = vtos %v125
    %v127 = vstv %s126
    %128 = vst [vmem:[%s1] sm:$0x1] %v127
  $region13: #{_entropy_loss_encap_impl.1} parent=0 // pred_fallthru
    _
  // Predicated region
  $region14: #{_entropy_loss_encap_impl.1} parent=0 // pred_check
    _
  $region15: #{_entropy_loss_encap_impl.1} parent=0 // pred_check_branch
    %130 = sbr.rel (0) target = $region17
  $region16: #{_entropy_loss_encap_impl.1} parent=0 // pred_region
    _
  $region17: #{_entropy_loss_encap_impl.1} parent=0 // pred_fallthru
    _
  // Predicated region
  $region18: #{_entropy_loss_encap_impl.1} parent=0 // pred_check
    _
  $region19: #{_entropy_loss_encap_impl.1} parent=0 // pred_check_branch
    %132 = sbr.rel (0) target = $region21
  $region20: #{_entropy_loss_encap_impl.1} parent=0 // pred_region
    _
  $region21: #{_entropy_loss_encap_impl.1} parent=0 // pred_fallthru
    _

</llo_original>
